<compile_context>
chip_gen: v7x
topology: tpu7x:2x2x1
jax: 0.10.0
libtpu: 0.0.40
codegen_flags: <defaults>
</compile_context>

<pallas_src>
import math

import jax
import jax.numpy as jnp
from jax.experimental import pallas as pl
from jax.experimental.pallas import tpu as pltpu

D = 4  # feature dim of the two Linear(4, 4) layers


def _attn_kernel(q_ref, k_ref, m_ref, r_ref, o_ref):
    """One grid step: a (bb, s_tile) block of queries against all T keys.

    q_ref: (bb, s_tile, D)  raw queries
    k_ref: (bb, D, T)       raw keys, pre-transposed (keys on lanes)
    m_ref: (D, D)           folded weight  M = Wq^T Wk / sqrt(D)
    r_ref: (1, 1, D)        folded bias    r = Wk^T bq / sqrt(D)
    o_ref: (bb, s_tile, T)  softmax(qk) over the key axis
    """
    q = q_ref[...]
    m = m_ref[...]

    # Fused query-side linear: D=4 broadcast multiply-adds on the VPU.
    qm = r_ref[...] + q[:, :, 0:1] * m[0:1, :]
    for d in range(1, D):
        qm = qm + q[:, :, d:d + 1] * m[d:d + 1, :]           # (bb, s_tile, D)

    # Scores on the MXU.  HIGHEST = full-f32 contraction; default bf16 passes
    # are not accurate enough for a ~1e-3-level check.
    s = jnp.einsum(
        "bsd,bdt->bst", qm, k_ref[...],
        preferred_element_type=jnp.float32,
        precision=jax.lax.Precision.HIGHEST,
    )                                                        # (bb, s_tile, T)

    # Numerically-stable softmax over the key axis.  The divide is one exact
    # reciprocal per (b, s) row followed by a broadcast multiply.
    s = s - jnp.max(s, axis=-1, keepdims=True)
    e = jnp.exp(s)
    inv = 1.0 / jnp.sum(e, axis=-1, keepdims=True)
    o_ref[...] = (e * inv).astype(o_ref.dtype)


def _pick_tiles(B, S, T, target_bytes=2 << 20):
    """Choose (batch_block, s_tile) so each f32 output block is ~target_bytes
    and the grid has multiple (parallel) steps for pipelining / megacore."""
    row_bytes = T * 4                            # one query row of f32 scores
    if S * row_bytes <= target_bytes:
        s_tile = S
        # Several batches per step, but keep >= min(8, B) steps on the batch
        # axis so DMA/compute overlap and both v7x TensorCores stay busy.
        cap = max(1, min(target_bytes // (S * row_bytes), B // min(8, B)))
        bb = max(d for d in range(1, cap + 1) if B % d == 0)
    else:
        bb = 1
        cands = [d for d in range(8, S + 1, 8)
                 if S % d == 0 and d * row_bytes <= target_bytes]
        if cands:
            s_tile = max(cands)
        elif S % 8 == 0:
            s_tile = 8         # smallest legal tile (block may exceed target)
        else:
            s_tile = S         # S not 8-divisible: must take the full extent
    return bb, s_tile


def model_forward(q1, k2, wq, bq, wk, bk, p3=None, *,
                  batch_block=None, s_block=None):
    """q1: (B,S,D), k2: (B,T,D); wq/wk: (D,D) PyTorch (out,in); bq/bk: (D,).

    `p3` and `bk` are accepted for API parity with the PyTorch module but are
    unused: their contribution to qk is constant along the softmax axis, so
    the softmax output is mathematically unchanged without them.
    """
    q1 = jnp.asarray(q1, jnp.float32)
    k2 = jnp.asarray(k2, jnp.float32)
    wq = jnp.asarray(wq, jnp.float32)
    wk = jnp.asarray(wk, jnp.float32)
    bq = jnp.asarray(bq, jnp.float32)
    del bk, p3  # softmax-invariant (see docstring)

    B, S, _ = q1.shape
    T = k2.shape[1]

    # ---- wrapper-side weight folding (O(D^2), done once) --------------------
    scale = 1.0 / math.sqrt(D)
    m_s = (wq.T @ wk) * scale                         # (D, D)
    r_s = ((wk.T @ bq) * scale).reshape(1, 1, D)      # (1, 1, D)

    # ---- pre-transpose K: keys on lanes, natural MXU RHS orientation --------
    # K is tiny next to the (B,S,T) output, so this extra pass is negligible.
    k_t = jnp.transpose(k2, (0, 2, 1))                # (B, D, T)

    # ---- tiling: ~2 MiB output blocks, multiple parallel grid steps ---------
    bb, s_tile = _pick_tiles(B, S, T)
    if batch_block is not None:
        bb = batch_block
    if s_block is not None:
        s_tile = s_block
    assert B % bb == 0 and S % s_tile == 0

    grid = (B // bb, S // s_tile)
    out = pl.pallas_call(
        _attn_kernel,
        out_shape=jax.ShapeDtypeStruct((B, S, T), jnp.float32),
        grid=grid,
        in_specs=[
            pl.BlockSpec((bb, s_tile, D), lambda i, j: (i, j, 0)),   # queries
            pl.BlockSpec((bb, D, T), lambda i, j: (i, 0, 0)),        # keys^T
            pl.BlockSpec((D, D), lambda i, j: (0, 0)),               # M
            pl.BlockSpec((1, 1, D), lambda i, j: (0, 0, 0)),         # r
        ],
        out_specs=pl.BlockSpec((bb, s_tile, T), lambda i, j: (i, j, 0)),
        compiler_params=pltpu.CompilerParams(
            dimension_semantics=("parallel", "parallel"),
        ),
    )(q1, k_t, m_s, r_s)
    return out


if __name__ == "__main__":
    # Full-f32 matmuls everywhere (reference + interpret-mode execution) so the
    # comparison is not dominated by bf16 MXU rounding.
    jax.config.update("jax_default_matmul_precision", "highest")

    key = jax.random.PRNGKey(0)
    kq, kk, kwq, kbq, kwk, kbk = jax.random.split(key, 6)

    B, S, T = 2, 8, 8
    q1 = jax.random.normal(kq, (B, S, D), jnp.float32)
    k2 = jax.random.normal(kk, (B, T, D), jnp.float32)

    # Deterministic parameter init (PyTorch Linear default-style uniform bound).
    bound = 1.0 / math.sqrt(D)
    wq = jax.random.uniform(kwq, (D, D), jnp.float32, -bound, bound)  # (out, in)
    bq = jax.random.uniform(kbq, (D,), jnp.float32, -bound, bound)
    wk = jax.random.uniform(kwk, (D, D), jnp.float32, -bound, bound)  # (out, in)
    bk = jax.random.uniform(kbk, (D,), jnp.float32, -bound, bound)
    p3 = jnp.float32(1.0)

    out = jax.block_until_ready(model_forward(q1, k2, wq, bq, wk, bk, p3))

    # Pure-JAX reference: the full, unfolded module math (both linears, the
    # 1/sqrt(D) scale and the + p3 bias) followed by softmax.
    Q = q1 @ wq.T + bq
    K = k2 @ wk.T + bk
    qk = jnp.einsum("bsd,btd->bst", Q, K,
                    precision=jax.lax.Precision.HIGHEST) / math.sqrt(D) + p3
    ref = jax.nn.softmax(qk, axis=-1)

    assert out.shape == (B, S, T)
    # Tolerance: the kernel is an exact algebraic refactoring (softmax shift
    # invariance) with exact normalisation; the margin only covers residual
    # MXU rounding if any backend ignores the HIGHEST-precision request.
    assert bool(jnp.allclose(out, ref, rtol=2e-2, atol=2e-3)), \
        "kernel/reference mismatch"

    print("KERNEL_OK")
</pallas_src>

<mosaic_0001>
module attributes {stable_mosaic.version = 11 : i64} {
  func.func @_attn_kernel(%arg0: i32, %arg1: i32, %arg2: memref<1x8x4xf32, #tpu.memory_space<vmem>>, %arg3: memref<1x4x8xf32, #tpu.memory_space<vmem>>, %arg4: memref<4x4xf32, #tpu.memory_space<vmem>>, %arg5: memref<1x1x4xf32, #tpu.memory_space<vmem>>, %arg6: memref<1x8x8xf32, #tpu.memory_space<vmem>>) attributes {dimension_semantics = [#tpu.dimension_semantics<parallel>, #tpu.dimension_semantics<parallel>], iteration_bounds = array<i64: 2, 1>, scalar_prefetch = 0 : i64, scratch_operands = 0 : i64, tpu.core_type = #tpu.core_type<tc>, window_params = [{transform_indices = @transform_0, window_bounds = array<i64: 1, 8, 4>}, {transform_indices = @transform_1, window_bounds = array<i64: 1, 4, 8>}, {pipeline_mode = #tpu.pipeline_mode<synchronous>, transform_indices = @transform_2, window_bounds = array<i64: 4, 4>}, {pipeline_mode = #tpu.pipeline_mode<synchronous>, transform_indices = @transform_3, window_bounds = array<i64: 1, 1, 4>}, {transform_indices = @transform_4, window_bounds = array<i64: 1, 8, 8>}]} {
    %c0 = arith.constant 0 : index
    %c0_0 = arith.constant 0 : index
    %c0_1 = arith.constant 0 : index
    %0 = vector.load %arg2[%c0, %c0_0, %c0_1] : memref<1x8x4xf32, #tpu.memory_space<vmem>>, vector<1x8x4xf32>
    %c0_2 = arith.constant 0 : index
    %c0_3 = arith.constant 0 : index
    %1 = vector.load %arg4[%c0_2, %c0_3] : memref<4x4xf32, #tpu.memory_space<vmem>>, vector<4x4xf32>
    %c0_4 = arith.constant 0 : index
    %c0_5 = arith.constant 0 : index
    %c0_6 = arith.constant 0 : index
    %2 = vector.load %arg5[%c0_4, %c0_5, %c0_6] : memref<1x1x4xf32, #tpu.memory_space<vmem>>, vector<1x1x4xf32>
    %3 = vector.extract_strided_slice %0 {offsets = [0, 0, 0], sizes = [1, 8, 1], strides = [1, 1, 1]} : vector<1x8x4xf32> to vector<1x8x1xf32>
    %4 = vector.extract_strided_slice %1 {offsets = [0, 0], sizes = [1, 4], strides = [1, 1]} : vector<4x4xf32> to vector<1x4xf32>
    %5 = vector.shape_cast %4 : vector<1x4xf32> to vector<1x1x4xf32>
    %6 = vector.broadcast %3 : vector<1x8x1xf32> to vector<1x8x4xf32>
    %7 = vector.broadcast %5 : vector<1x1x4xf32> to vector<1x8x4xf32>
    %8 = arith.mulf %6, %7 : vector<1x8x4xf32>
    %9 = vector.broadcast %2 : vector<1x1x4xf32> to vector<1x8x4xf32>
    %10 = arith.addf %9, %8 : vector<1x8x4xf32>
    %11 = vector.extract_strided_slice %0 {offsets = [0, 0, 1], sizes = [1, 8, 1], strides = [1, 1, 1]} : vector<1x8x4xf32> to vector<1x8x1xf32>
    %12 = vector.extract_strided_slice %1 {offsets = [1, 0], sizes = [1, 4], strides = [1, 1]} : vector<4x4xf32> to vector<1x4xf32>
    %13 = vector.shape_cast %12 : vector<1x4xf32> to vector<1x1x4xf32>
    %14 = vector.broadcast %11 : vector<1x8x1xf32> to vector<1x8x4xf32>
    %15 = vector.broadcast %13 : vector<1x1x4xf32> to vector<1x8x4xf32>
    %16 = arith.mulf %14, %15 : vector<1x8x4xf32>
    %17 = arith.addf %10, %16 : vector<1x8x4xf32>
    %18 = vector.extract_strided_slice %0 {offsets = [0, 0, 2], sizes = [1, 8, 1], strides = [1, 1, 1]} : vector<1x8x4xf32> to vector<1x8x1xf32>
    %19 = vector.extract_strided_slice %1 {offsets = [2, 0], sizes = [1, 4], strides = [1, 1]} : vector<4x4xf32> to vector<1x4xf32>
    %20 = vector.shape_cast %19 : vector<1x4xf32> to vector<1x1x4xf32>
    %21 = vector.broadcast %18 : vector<1x8x1xf32> to vector<1x8x4xf32>
    %22 = vector.broadcast %20 : vector<1x1x4xf32> to vector<1x8x4xf32>
    %23 = arith.mulf %21, %22 : vector<1x8x4xf32>
    %24 = arith.addf %17, %23 : vector<1x8x4xf32>
    %25 = vector.extract_strided_slice %0 {offsets = [0, 0, 3], sizes = [1, 8, 1], strides = [1, 1, 1]} : vector<1x8x4xf32> to vector<1x8x1xf32>
    %26 = vector.extract_strided_slice %1 {offsets = [3, 0], sizes = [1, 4], strides = [1, 1]} : vector<4x4xf32> to vector<1x4xf32>
    %27 = vector.shape_cast %26 : vector<1x4xf32> to vector<1x1x4xf32>
    %28 = vector.broadcast %25 : vector<1x8x1xf32> to vector<1x8x4xf32>
    %29 = vector.broadcast %27 : vector<1x1x4xf32> to vector<1x8x4xf32>
    %30 = arith.mulf %28, %29 : vector<1x8x4xf32>
    %31 = arith.addf %24, %30 : vector<1x8x4xf32>
    %c0_7 = arith.constant 0 : index
    %c0_8 = arith.constant 0 : index
    %c0_9 = arith.constant 0 : index
    %32 = vector.load %arg3[%c0_7, %c0_8, %c0_9] : memref<1x4x8xf32, #tpu.memory_space<vmem>>, vector<1x4x8xf32>
    "tpu.trace_start"() <{level = 10 : i32, message = "bsd,bdt->bst"}> : () -> ()
    %cst = arith.constant dense<0.000000e+00> : vector<1x8x8xf32>
    %33 = tpu.matmul %31, %32, %cst {dimension_numbers = #tpu.dot_dimension_numbers<[2], [1], [1], [2], [0, 0, 0, 1, 1, 2], [0], [0]>, precision = #tpu.contract_precision<fp32>} : vector<1x8x4xf32>, vector<1x4x8xf32>, vector<1x8x8xf32> -> vector<1x8x8xf32>
    "tpu.trace_stop"() : () -> ()
    %cst_10 = arith.constant dense<0xFF800000> : vector<1x8xf32>
    %34 = vector.multi_reduction <maximumf>, %33, %cst_10 [2] : vector<1x8x8xf32> to vector<1x8xf32>
    %35 = vector.shape_cast %34 : vector<1x8xf32> to vector<1x8x1xf32>
    %36 = vector.broadcast %35 : vector<1x8x1xf32> to vector<1x8x8xf32>
    %37 = arith.subf %33, %36 : vector<1x8x8xf32>
    %38 = math.exp %37 : vector<1x8x8xf32>
    %cst_11 = arith.constant dense<0.000000e+00> : vector<1x8xf32>
    %39 = vector.multi_reduction <add>, %38, %cst_11 [2] : vector<1x8x8xf32> to vector<1x8xf32>
    %40 = vector.shape_cast %39 : vector<1x8xf32> to vector<1x8x1xf32>
    %cst_12 = arith.constant 1.000000e+00 : f32
    %41 = vector.broadcast %cst_12 : f32 to vector<1x8x1xf32>
    %42 = arith.divf %41, %40 : vector<1x8x1xf32>
    %43 = vector.broadcast %42 : vector<1x8x1xf32> to vector<1x8x8xf32>
    %44 = arith.mulf %38, %43 : vector<1x8x8xf32>
    %c0_13 = arith.constant 0 : index
    %c0_14 = arith.constant 0 : index
    %c0_15 = arith.constant 0 : index
    %45 = vector.load %arg6[%c0_13, %c0_14, %c0_15] : memref<1x8x8xf32, #tpu.memory_space<vmem>>, vector<1x8x8xf32>
    tpu.vector_store %arg6[%c0_13, %c0_14, %c0_15], %44 {strides = array<i32>} : memref<1x8x8xf32, #tpu.memory_space<vmem>>, vector<1x8x8xf32>,
    return
  }
  func.func @transform_0(%arg0: i32, %arg1: i32) -> (i32, i32, i32) {
    %c0_i32 = arith.constant 0 : i32
    %c0_i32_0 = arith.constant 0 : i32
    return %arg0, %arg1, %c0_i32 : i32, i32, i32
  }
  func.func @transform_1(%arg0: i32, %arg1: i32) -> (i32, i32, i32) {
    %c0_i32 = arith.constant 0 : i32
    %c0_i32_0 = arith.constant 0 : i32
    %c0_i32_1 = arith.constant 0 : i32
    return %arg0, %c0_i32, %c0_i32_0 : i32, i32, i32
  }
  func.func @transform_2(%arg0: i32, %arg1: i32) -> (i32, i32) {
    %c0_i32 = arith.constant 0 : i32
    %c0_i32_0 = arith.constant 0 : i32
    %c0_i32_1 = arith.constant 0 : i32
    return %c0_i32, %c0_i32_0 : i32, i32
  }
  func.func @transform_3(%arg0: i32, %arg1: i32) -> (i32, i32, i32) {
    %c0_i32 = arith.constant 0 : i32
    %c0_i32_0 = arith.constant 0 : i32
    %c0_i32_1 = arith.constant 0 : i32
    %c0_i32_2 = arith.constant 0 : i32
    return %c0_i32, %c0_i32_0, %c0_i32_1 : i32, i32, i32
  }
  func.func @transform_4(%arg0: i32, %arg1: i32) -> (i32, i32, i32) {
    %c0_i32 = arith.constant 0 : i32
    %c0_i32_0 = arith.constant 0 : i32
    return %arg0, %arg1, %c0_i32 : i32, i32, i32
  }
}

</mosaic_0001>

<llo_original>
// kernel: tpu_custom_call.1
$region0: #{tpu_custom_call.1}
  #allocation0 [shape = 'u32[]', space=smem, size = 0x4, offset = 0x4, fixed_abs, tag = 'smem constant byte address 0x4 - core index']
  #allocation1 [shape = 'u32[144,128]{1,0:T(1,128)}', space=vmem, size = 0x12000, scoped, tag = 'internal scratch']
  %s0 = inlined_call_operand.vmem [shape: f32[2,8,4], index: 0, kind: input, shape index: {}]
  %s1 = inlined_call_operand.vmem [shape: f32[2,4,8], index: 1, kind: input, shape index: {}]
  %s2 = inlined_call_operand.vmem [shape: f32[4,4], index: 2, kind: input, shape index: {}]
  %s3 = inlined_call_operand.vmem [shape: f32[1,1,4], index: 3, kind: input, shape index: {}]
  %s4 = inlined_call_operand.hbm [shape: f32[2,8,8], index: 4, kind: output, shape index: {}]
  %s5 = sld [smem:[#allocation0]]
  $region49: #{tpu_custom_call.1} parent=0
    _
  %s7 = ssub.s32 1, %s5
  %s8 = scalar_select 0, %s7, %s5
  $region1: #{tpu_custom_call.1} parent=0
    #allocation2 [shape = 'u8[8192]{0}', space=vmem, size = 0x2000, scoped, tag = 'output window, operand 0']
    #allocation3 [shape = 's32[2]{0}', space=sflag, size = 0x8, scoped, tag = 'scoped memory for tpu_custom_call.1']
    %9 = vsyncpa [#allocation3], 0
    %s10 = scalar_lea.sflag [#allocation3], 1
    %11 = vsyncpa %s10, 0
    loop: start=0, step=1, limit=4
    $region2: #{tpu_custom_call.1} parent=1 // loop_pre_header
      _
    $region3: #{tpu_custom_call.1} parent=1 // loop_header
      %s13 = sphi 0, %s17
      %p14 = scmp.ge.s32.totalorder %s13, 4
      %s20 = sphi 0, %s32
      %s21 = sphi 0, %s28
      %s22 = sphi 0, %s20
      %s23 = sphi 0, %s21
      %s24 = sphi 0, %s22
      %s25 = sphi 0, %s23
      %s37 = sphi 0, %s39
      %s40 = sphi 0, %s37
      %s41 = sphi 0, %s40
      %s57 = sphi 0, %s41
      %s63 = sphi 0, %s65
      %s66 = sphi 0, %s63
      %s67 = sphi 0, %s66
      %s83 = sphi 0, %s67
      %s87 = sphi 0, %s87
      %s89 = sphi 0, %s87
      %s90 = sphi 0, %s89
      %s104 = sphi 0, %s90
      %s108 = sphi 0, %s108
      %s110 = sphi 0, %s108
      %s111 = sphi 0, %s110
      %s125 = sphi 0, %s111
      %s133 = sphi 0, %s135
      %s136 = sphi 0, %s133
      %s137 = sphi 0, %s136
      %s153 = sphi 0, %s137
    $region4: #{tpu_custom_call.1} parent=1 // loop_header_branch
      %16 = sbr.rel (%p14) target = $region8
    $region5: #{tpu_custom_call.1} parent=1 // loop_body
      %s18 = ssub.s32 %s13, 1
      %s19 = ssub.s32 %s13, 2
      %s26 = sadd.s32 1, %s21
      %p27 = scmp.ge.s32.totalorder %s26, 1
      %s28 = scalar_select %p27, 0, %s26
      %s29 = sadd.s32 1, %s20
      %s30 = scalar_select %p27, %s29, %s20
      %p31 = scmp.ge.s32.totalorder %s30, 2
      %s32 = scalar_select %p31, 0, %s30
      %s33 = ssub.s32 %s20, %s32
      %s34 = ssub.s32 %s21, %s28
      %s35 = sor.u32 %s33, %s34
      %p36 = scmp.eq.s32.totalorder %s35, 0
      %s38 = sadd.s32 %s37, 1
      %s39 = scalar_select %p36, %s37, %s38
      %p42 = pneg %p36
      %p43 = scmp.eq.s32.totalorder %s13, 1
      %p44 = por %p42, %p43
      %p45 = scmp.ne.s32.totalorder %s37, %s40
      %p46 = scmp.eq.s32.totalorder %s13, 0
      %p47 = por %p45, %p46
      %p48 = scmp.ne.s32.totalorder %s37, %s40
      %p49 = scmp.eq.s32.totalorder %s18, 1
      %p50 = por %p48, %p49
      %p51 = scmp.ne.s32.totalorder %s40, %s41
      %p52 = scmp.eq.s32.totalorder %s18, 0
      %p53 = por %p51, %p52
      %p54 = scmp.ne.s32.totalorder %s40, %s41
      %p55 = scmp.eq.s32.totalorder %s19, 1
      %p56 = por %p54, %p55
      %p58 = scmp.ne.s32.totalorder %s41, %s57
      %p59 = scmp.eq.s32.totalorder %s19, 0
      %p60 = por %p58, %p59
      %s61 = ssub.s32 %s20, %s32
      %p62 = scmp.eq.s32.totalorder %s61, 0
      %s64 = sadd.s32 %s63, 1
      %s65 = scalar_select %p62, %s63, %s64
      %p68 = pneg %p62
      %p69 = scmp.eq.s32.totalorder %s13, 1
      %p70 = por %p68, %p69
      %p71 = scmp.ne.s32.totalorder %s63, %s66
      %p72 = scmp.eq.s32.totalorder %s13, 0
      %p73 = por %p71, %p72
      %p74 = scmp.ne.s32.totalorder %s63, %s66
      %p75 = scmp.eq.s32.totalorder %s18, 1
      %p76 = por %p74, %p75
      %p77 = scmp.ne.s32.totalorder %s66, %s67
      %p78 = scmp.eq.s32.totalorder %s18, 0
      %p79 = por %p77, %p78
      %p80 = scmp.ne.s32.totalorder %s66, %s67
      %p81 = scmp.eq.s32.totalorder %s19, 1
      %p82 = por %p80, %p81
      %p84 = scmp.ne.s32.totalorder %s67, %s83
      %p85 = scmp.eq.s32.totalorder %s19, 0
      %p86 = por %p84, %p85
      %s88 = sadd.s32 %s87, 1
      %p91 = scmp.eq.s32.totalorder %s13, 1
      %p92 = scmp.ne.s32.totalorder %s87, %s89
      %p93 = scmp.eq.s32.totalorder %s13, 0
      %p94 = por %p92, %p93
      %p95 = scmp.ne.s32.totalorder %s87, %s89
      %p96 = scmp.eq.s32.totalorder %s18, 1
      %p97 = por %p95, %p96
      %p98 = scmp.ne.s32.totalorder %s89, %s90
      %p99 = scmp.eq.s32.totalorder %s18, 0
      %p100 = por %p98, %p99
      %p101 = scmp.ne.s32.totalorder %s89, %s90
      %p102 = scmp.eq.s32.totalorder %s19, 1
      %p103 = por %p101, %p102
      %p105 = scmp.ne.s32.totalorder %s90, %s104
      %p106 = scmp.eq.s32.totalorder %s19, 0
      %p107 = por %p105, %p106
      %s109 = sadd.s32 %s108, 1
      %p112 = scmp.eq.s32.totalorder %s13, 1
      %p113 = scmp.ne.s32.totalorder %s108, %s110
      %p114 = scmp.eq.s32.totalorder %s13, 0
      %p115 = por %p113, %p114
      %p116 = scmp.ne.s32.totalorder %s108, %s110
      %p117 = scmp.eq.s32.totalorder %s18, 1
      %p118 = por %p116, %p117
      %p119 = scmp.ne.s32.totalorder %s110, %s111
      %p120 = scmp.eq.s32.totalorder %s18, 0
      %p121 = por %p119, %p120
      %p122 = scmp.ne.s32.totalorder %s110, %s111
      %p123 = scmp.eq.s32.totalorder %s19, 1
      %p124 = por %p122, %p123
      %p126 = scmp.ne.s32.totalorder %s111, %s125
      %p127 = scmp.eq.s32.totalorder %s19, 0
      %p128 = por %p126, %p127
      %s129 = ssub.s32 %s20, %s32
      %s130 = ssub.s32 %s21, %s28
      %s131 = sor.u32 %s129, %s130
      %p132 = scmp.eq.s32.totalorder %s131, 0
      %s134 = sadd.s32 %s133, 1
      %s135 = scalar_select %p132, %s133, %s134
      %p138 = pneg %p132
      %p139 = scmp.eq.s32.totalorder %s13, 1
      %p140 = por %p138, %p139
      %p141 = scmp.ne.s32.totalorder %s133, %s136
      %p142 = scmp.eq.s32.totalorder %s13, 0
      %p143 = por %p141, %p142
      %p144 = scmp.ne.s32.totalorder %s133, %s136
      %p145 = scmp.eq.s32.totalorder %s18, 1
      %p146 = por %p144, %p145
      %p147 = scmp.ne.s32.totalorder %s136, %s137
      %p148 = scmp.eq.s32.totalorder %s18, 0
      %p149 = por %p147, %p148
      %p150 = scmp.ne.s32.totalorder %s136, %s137
      %p151 = scmp.eq.s32.totalorder %s19, 1
      %p152 = por %p150, %p151
      %p154 = scmp.ne.s32.totalorder %s137, %s153
      %p155 = scmp.eq.s32.totalorder %s19, 0
      %p156 = por %p154, %p155
      %p157 = scmp.le.s32.totalorder 1, %s13
      %p158 = scmp.lt.s32.totalorder %s13, 3
      %p159 = pnand %p157, %p158
      %p160 = pneg %p159
      // Predicated region
      $region9: #{tpu_custom_call.1} parent=5 // pred_check
        _
      $region10: #{tpu_custom_call.1} parent=5 // pred_check_branch
        %162 = sbr.rel (%p159) target = $region12
      $region11: #{tpu_custom_call.1} parent=5 // pred_region
        %s163 = ssub.s32 %s13, 1
        // Predicated region
        $region13: #{tpu_custom_call.1} parent=11 // pred_check
          %p164 = pneg %p100
        $region14: #{tpu_custom_call.1} parent=11 // pred_check_branch
          %166 = sbr.rel (%p164) target = $region16
        $region15: #{tpu_custom_call.1} parent=11 // pred_region
          _
        $region16: #{tpu_custom_call.1} parent=11 // pred_fallthru
          _
        // Predicated region
        $region17: #{tpu_custom_call.1} parent=11 // pred_check
          %p167 = pneg %p121
        $region18: #{tpu_custom_call.1} parent=11 // pred_check_branch
          %169 = sbr.rel (%p167) target = $region20
        $region19: #{tpu_custom_call.1} parent=11 // pred_region
          _
        $region20: #{tpu_custom_call.1} parent=11 // pred_fallthru
          _
      $region12: #{tpu_custom_call.1} parent=5 // pred_fallthru
        _
      %p170 = scmp.lt.s32.totalorder %s13, 2
      // Predicated region
      $region21: #{tpu_custom_call.1} parent=5 // pred_check
        %p171 = pneg %p170
      $region22: #{tpu_custom_call.1} parent=5 // pred_check_branch
        %173 = sbr.rel (%p171) target = $region24
      $region23: #{tpu_custom_call.1} parent=5 // pred_region
        // Predicated region
        $region25: #{tpu_custom_call.1} parent=23 // pred_check
          %p174 = pneg %p47
        $region26: #{tpu_custom_call.1} parent=23 // pred_check_branch
          %176 = sbr.rel (%p174) target = $region28
        $region27: #{tpu_custom_call.1} parent=23 // pred_region
          %p177 = scmp.lt.s32.totalorder %s20, 1
          %s178 = scalar_select %p177, %s20, 1
          %p179 = scmp.lt.s32.totalorder %s21, 0
          %s180 = scalar_select %p179, %s21, 0
          %s181 = sadd.s32 %s180, %s178
          %s182 = smul.addr %s181, 8
          %s183 = scalar_lea.vmem %s0, %s182
        $region28: #{tpu_custom_call.1} parent=23 // pred_fallthru
          _
        // Predicated region
        $region29: #{tpu_custom_call.1} parent=23 // pred_check
          %p184 = pneg %p73
        $region30: #{tpu_custom_call.1} parent=23 // pred_check_branch
          %186 = sbr.rel (%p184) target = $region32
        $region31: #{tpu_custom_call.1} parent=23 // pred_region
          %p187 = scmp.lt.s32.totalorder %s20, 1
          %s188 = scalar_select %p187, %s20, 1
          %s189 = smul.addr %s188, 4
          %s190 = scalar_lea.vmem %s1, %s189
        $region32: #{tpu_custom_call.1} parent=23 // pred_fallthru
          _
      $region24: #{tpu_custom_call.1} parent=5 // pred_fallthru
        _
      %p191 = scmp.le.s32.totalorder 1, %s13
      %p192 = scmp.lt.s32.totalorder %s13, 3
      %p193 = pnand %p191, %p192
      %p194 = pneg %p193
      // Predicated region
      $region33: #{tpu_custom_call.1} parent=5 // pred_check
        _
      $region34: #{tpu_custom_call.1} parent=5 // pred_check_branch
        %196 = sbr.rel (%p193) target = $region36
      $region35: #{tpu_custom_call.1} parent=5 // pred_region
        %s197 = ssub.s32 %s13, 1
        %p198 = scmp.lt.s32.totalorder %s22, 1
        %s199 = scalar_select %p198, %s22, 1
        %p200 = scmp.lt.s32.totalorder %s23, 0
        %s201 = scalar_select %p200, %s23, 0
        %s202 = sadd.s32 %s201, %s199
        %s203 = smul.addr %s202, 8
        %s204 = scalar_lea.vmem %s0, %s203
        %p205 = pneg %p53
        %p206 = pneg %p50
        %p207 = scmp.lt.s32.totalorder %s22, 1
        %s208 = scalar_select %p207, %s22, 1
        %s209 = smul.addr %s208, 4
        %s210 = scalar_lea.vmem %s1, %s209
        %p211 = pneg %p79
        %p212 = pneg %p76
        %p213 = pneg %p100
        %p214 = pneg %p97
        %p215 = pneg %p121
        %p216 = pneg %p118
        %p217 = pneg %p149
        %p218 = pneg %p146
        %s219 = sand.u32 %s136, 1
        %s220 = scalar_lea.sflag [#allocation3], %s219
        %s221 = sand.u32 %s136, 1
        %s222 = smul.addr %s221, 8
        %s223 = scalar_lea.vmem [#allocation2], %s222
        %p224 = scmp.lt.s32.totalorder %s22, 1
        %s225 = scalar_select %p224, %s22, 1
        %p226 = scmp.lt.s32.totalorder %s23, 0
        %s227 = scalar_select %p226, %s23, 0
        %s228 = sadd.s32 %s227, %s225
        %s229 = smul.addr %s228, 8
        %s230 = scalar_lea.vmem %s0, %s229
        %p231 = scmp.lt.s32.totalorder %s22, 1
        %s232 = scalar_select %p231, %s22, 1
        %s233 = smul.addr %s232, 4
        %s234 = scalar_lea.vmem %s1, %s233
        %v235 = vld [vmem:[%s230] sm:$0xff]
        %v236 = vld [vmem:[%s2] sm:$0xf]
        %v237 = vld [vmem:[%s3] sm:$0x1]
        %239 = vset.pattern.permute.xlu0 0
        %240 = vperm.xlu0 %239, %v235
        %v241 = vpop.permute.xlu0 %240
        %v243 = vlaneseq
        %v244 = vshrl.u32 %v243, 7
        %v245 = vsub.s32 0, %v244
        %v246 = vrot.slane %v236, %v245
        %v247 = vmul.f32 %v241, %v246
        %v249 = vlaneseq
        %v250 = vshrl.u32 %v249, 7
        %v251 = vsub.s32 0, %v250
        %v252 = vrot.slane %v237, %v251
        %v254 = vadd.f32 %v252, %v247
        %255 = vset.pattern.permute.xlu0 1
        %256 = vperm.xlu0 %255, %v235
        %v257 = vpop.permute.xlu0 %256
        %v259 = vlaneseq
        %v260 = vshrl.u32 %v259, 7
        %v261 = vsub.s32 1, %v260
        %v262 = vrot.slane %v236, %v261
        %v263 = vmul.f32 %v257, %v262
        %v264 = vadd.f32 %v254, %v263
        %265 = vset.pattern.permute.xlu0 2
        %266 = vperm.xlu0 %265, %v235
        %v267 = vpop.permute.xlu0 %266
        %v269 = vlaneseq
        %v270 = vshrl.u32 %v269, 7
        %v271 = vsub.s32 2, %v270
        %v272 = vrot.slane %v236, %v271
        %v273 = vmul.f32 %v267, %v272
        %v274 = vadd.f32 %v264, %v273
        %275 = vset.pattern.permute.xlu0 3
        %276 = vperm.xlu0 %275, %v235
        %v277 = vpop.permute.xlu0 %276
        %v279 = vlaneseq
        %v280 = vshrl.u32 %v279, 7
        %v281 = vsub.s32 3, %v280
        %v282 = vrot.slane %v236, %v281
        %v283 = vmul.f32 %v277, %v282
        %v284 = vadd.f32 %v274, %v283
        %v285 = vld [vmem:[%s234] sm:$0xf]
        %vm286 = vcmask 31744
        %v288 = vsel %vm286, %v284, 0
        %vm290 = vcmask 1043456
        %v292 = vsel %vm290, %v285, 0
        %294 = vmatprep.subr.mxu0 0.0
        %v295 = vand.u32 %v292, 4294901760
        %296 = vmatpush1.msra.mxu0 %v295
        %297 = vmatprep.subr.mxu0 0.0
        %298 = vmatpush1.msra.mxu0 0.0
        %299 = vmatprep.subr.mxu0 0.0
        %300 = vmatpush1.msra.mxu0 0.0
        %301 = vmatprep.subr.mxu0 0.0
        %302 = vmatpush1.msra.mxu0 0.0
        %303 = vmatprep.subr.mxu0 0.0
        %304 = vmatpush1.msra.mxu0 0.0
        %305 = vmatprep.subr.mxu0 0.0
        %306 = vmatpush1.msra.mxu0 0.0
        %307 = vmatprep.subr.mxu0 0.0
        %308 = vmatpush1.msra.mxu0 0.0
        %309 = vmatprep.subr.mxu0 0.0
        %310 = vmatpush1.msra.mxu0 0.0
        %311 = vmatprep.subr.mxu0 0.0
        %312 = vmatpush1.msra.mxu0 0.0
        %313 = vmatprep.subr.mxu0 0.0
        %314 = vmatpush1.msra.mxu0 0.0
        %315 = vmatprep.subr.mxu0 0.0
        %316 = vmatpush1.msra.mxu0 0.0
        %317 = vmatprep.subr.mxu0 0.0
        %318 = vmatpush1.msra.mxu0 0.0
        %319 = vmatprep.subr.mxu0 0.0
        %320 = vmatpush1.msra.mxu0 0.0
        %321 = vmatprep.subr.mxu0 0.0
        %322 = vmatpush1.msra.mxu0 0.0
        %323 = vmatprep.subr.mxu0 0.0
        %324 = vmatpush1.msra.mxu0 0.0
        %325 = vmatprep.subr.mxu0 0.0
        %326 = vmatpush1.msra.mxu0 0.0
        %327 = vmatprep.subr.mxu0 0.0
        %328 = vmatpush1.msra.mxu0 0.0
        %329 = vmatprep.subr.mxu0 0.0
        %330 = vmatpush1.msra.mxu0 0.0
        %331 = vmatprep.subr.mxu0 0.0
        %332 = vmatpush1.msra.mxu0 0.0
        %333 = vmatprep.subr.mxu0 0.0
        %334 = vmatpush1.msra.mxu0 0.0
        %335 = vmatprep.subr.mxu0 0.0
        %336 = vmatpush1.msra.mxu0 0.0
        %337 = vmatprep.subr.mxu0 0.0
        %338 = vmatpush1.msra.mxu0 0.0
        %339 = vmatprep.subr.mxu0 0.0
        %340 = vmatpush1.msra.mxu0 0.0
        %341 = vmatprep.subr.mxu0 0.0
        %342 = vmatpush1.msra.mxu0 0.0
        %343 = vmatprep.subr.mxu0 0.0
        %344 = vmatpush1.msra.mxu0 0.0
        %345 = vmatprep.subr.mxu0 0.0
        %346 = vmatpush1.msra.mxu0 0.0
        %347 = vmatprep.subr.mxu0 0.0
        %348 = vmatpush1.msra.mxu0 0.0
        %349 = vmatprep.subr.mxu0 0.0
        %350 = vmatpush1.msra.mxu0 0.0
        %351 = vmatprep.subr.mxu0 0.0
        %352 = vmatpush1.msra.mxu0 0.0
        %353 = vmatprep.subr.mxu0 0.0
        %354 = vmatpush1.msra.mxu0 0.0
        %355 = vmatprep.subr.mxu0 0.0
        %356 = vmatpush1.msra.mxu0 0.0
        %357 = vmatprep.subr.mxu0 0.0
        %358 = vmatpush1.msra.mxu0 0.0
        %359 = vmatprep.mubr.f32.mxu0 0.0
        %v360 = vand.u32 %v288, 4294901760
        %v361 = vsub.f32 %v288, %v360
        %v362 = vand.u32 %v361, 4294901760
        %v363 = vsub.f32 %v361, %v362
        %v364 = vand.u32 %v363, 4294901760
        %365 = vmatmul.mubr.f32.gmra.mrb[0].mxu0 %v364
        %v366 = vpop.f32.mrb[0].mxu0
        %v367 = vadd.f32 0.0, %v366
        %v368 = vpop.f32.mrb[0].mxu0
        %369 = vdwg.mxu0
        %370 = vmatprep.subr.mxu0 0.0
        %v371 = vand.u32 %v292, 4294901760
        %v372 = vsub.f32 %v292, %v371
        %v373 = vand.u32 %v372, 4294901760
        %v374 = vsub.f32 %v372, %v373
        %v375 = vand.u32 %v374, 4294901760
        %376 = vmatpush1.msra.mxu0 %v375
        %377 = vmatprep.subr.mxu0 0.0
        %378 = vmatpush1.msra.mxu0 0.0
        %379 = vmatprep.subr.mxu0 0.0
        %380 = vmatpush1.msra.mxu0 0.0
        %381 = vmatprep.subr.mxu0 0.0
        %382 = vmatpush1.msra.mxu0 0.0
        %383 = vmatprep.subr.mxu0 0.0
        %384 = vmatpush1.msra.mxu0 0.0
        %385 = vmatprep.subr.mxu0 0.0
        %386 = vmatpush1.msra.mxu0 0.0
        %387 = vmatprep.subr.mxu0 0.0
        %388 = vmatpush1.msra.mxu0 0.0
        %389 = vmatprep.subr.mxu0 0.0
        %390 = vmatpush1.msra.mxu0 0.0
        %391 = vmatprep.subr.mxu0 0.0
        %392 = vmatpush1.msra.mxu0 0.0
        %393 = vmatprep.subr.mxu0 0.0
        %394 = vmatpush1.msra.mxu0 0.0
        %395 = vmatprep.subr.mxu0 0.0
        %396 = vmatpush1.msra.mxu0 0.0
        %397 = vmatprep.subr.mxu0 0.0
        %398 = vmatpush1.msra.mxu0 0.0
        %399 = vmatprep.subr.mxu0 0.0
        %400 = vmatpush1.msra.mxu0 0.0
        %401 = vmatprep.subr.mxu0 0.0
        %402 = vmatpush1.msra.mxu0 0.0
        %403 = vmatprep.subr.mxu0 0.0
        %404 = vmatpush1.msra.mxu0 0.0
        %405 = vmatprep.subr.mxu0 0.0
        %406 = vmatpush1.msra.mxu0 0.0
        %407 = vmatprep.subr.mxu0 0.0
        %408 = vmatpush1.msra.mxu0 0.0
        %409 = vmatprep.subr.mxu0 0.0
        %410 = vmatpush1.msra.mxu0 0.0
        %411 = vmatprep.subr.mxu0 0.0
        %412 = vmatpush1.msra.mxu0 0.0
        %413 = vmatprep.subr.mxu0 0.0
        %414 = vmatpush1.msra.mxu0 0.0
        %415 = vmatprep.subr.mxu0 0.0
        %416 = vmatpush1.msra.mxu0 0.0
        %417 = vmatprep.subr.mxu0 0.0
        %418 = vmatpush1.msra.mxu0 0.0
        %419 = vmatprep.subr.mxu0 0.0
        %420 = vmatpush1.msra.mxu0 0.0
        %421 = vmatprep.subr.mxu0 0.0
        %422 = vmatpush1.msra.mxu0 0.0
        %423 = vmatprep.subr.mxu0 0.0
        %424 = vmatpush1.msra.mxu0 0.0
        %425 = vmatprep.subr.mxu0 0.0
        %426 = vmatpush1.msra.mxu0 0.0
        %427 = vmatprep.subr.mxu0 0.0
        %428 = vmatpush1.msra.mxu0 0.0
        %429 = vmatprep.subr.mxu0 0.0
        %430 = vmatpush1.msra.mxu0 0.0
        %431 = vmatprep.subr.mxu0 0.0
        %432 = vmatpush1.msra.mxu0 0.0
        %433 = vmatprep.subr.mxu0 0.0
        %434 = vmatpush1.msra.mxu0 0.0
        %435 = vmatprep.subr.mxu0 0.0
        %436 = vmatpush1.msra.mxu0 0.0
        %437 = vmatprep.subr.mxu0 0.0
        %438 = vmatpush1.msra.mxu0 0.0
        %439 = vmatprep.mubr.f32.mxu0 0.0
        %v440 = vand.u32 %v288, 4294901760
        %441 = vmatmul.mubr.f32.gmra.mrb[0].mxu0 %v440
        %v442 = vpop.f32.mrb[0].mxu0
        %v443 = vadd.f32 %v367, %v442
        %v444 = vpop.f32.mrb[0].mxu0
        %445 = vdwg.mxu0
        %446 = vmatprep.subr.mxu0 0.0
        %v447 = vand.u32 %v292, 4294901760
        %v448 = vsub.f32 %v292, %v447
        %449 = vmatpush1.msra.mxu0 %v448
        %450 = vmatprep.subr.mxu0 0.0
        %451 = vmatpush1.msra.mxu0 0.0
        %452 = vmatprep.subr.mxu0 0.0
        %453 = vmatpush1.msra.mxu0 0.0
        %454 = vmatprep.subr.mxu0 0.0
        %455 = vmatpush1.msra.mxu0 0.0
        %456 = vmatprep.subr.mxu0 0.0
        %457 = vmatpush1.msra.mxu0 0.0
        %458 = vmatprep.subr.mxu0 0.0
        %459 = vmatpush1.msra.mxu0 0.0
        %460 = vmatprep.subr.mxu0 0.0
        %461 = vmatpush1.msra.mxu0 0.0
        %462 = vmatprep.subr.mxu0 0.0
        %463 = vmatpush1.msra.mxu0 0.0
        %464 = vmatprep.subr.mxu0 0.0
        %465 = vmatpush1.msra.mxu0 0.0
        %466 = vmatprep.subr.mxu0 0.0
        %467 = vmatpush1.msra.mxu0 0.0
        %468 = vmatprep.subr.mxu0 0.0
        %469 = vmatpush1.msra.mxu0 0.0
        %470 = vmatprep.subr.mxu0 0.0
        %471 = vmatpush1.msra.mxu0 0.0
        %472 = vmatprep.subr.mxu0 0.0
        %473 = vmatpush1.msra.mxu0 0.0
        %474 = vmatprep.subr.mxu0 0.0
        %475 = vmatpush1.msra.mxu0 0.0
        %476 = vmatprep.subr.mxu0 0.0
        %477 = vmatpush1.msra.mxu0 0.0
        %478 = vmatprep.subr.mxu0 0.0
        %479 = vmatpush1.msra.mxu0 0.0
        %480 = vmatprep.subr.mxu0 0.0
        %481 = vmatpush1.msra.mxu0 0.0
        %482 = vmatprep.subr.mxu0 0.0
        %483 = vmatpush1.msra.mxu0 0.0
        %484 = vmatprep.subr.mxu0 0.0
        %485 = vmatpush1.msra.mxu0 0.0
        %486 = vmatprep.subr.mxu0 0.0
        %487 = vmatpush1.msra.mxu0 0.0
        %488 = vmatprep.subr.mxu0 0.0
        %489 = vmatpush1.msra.mxu0 0.0
        %490 = vmatprep.subr.mxu0 0.0
        %491 = vmatpush1.msra.mxu0 0.0
        %492 = vmatprep.subr.mxu0 0.0
        %493 = vmatpush1.msra.mxu0 0.0
        %494 = vmatprep.subr.mxu0 0.0
        %495 = vmatpush1.msra.mxu0 0.0
        %496 = vmatprep.subr.mxu0 0.0
        %497 = vmatpush1.msra.mxu0 0.0
        %498 = vmatprep.subr.mxu0 0.0
        %499 = vmatpush1.msra.mxu0 0.0
        %500 = vmatprep.subr.mxu0 0.0
        %501 = vmatpush1.msra.mxu0 0.0
        %502 = vmatprep.subr.mxu0 0.0
        %503 = vmatpush1.msra.mxu0 0.0
        %504 = vmatprep.subr.mxu0 0.0
        %505 = vmatpush1.msra.mxu0 0.0
        %506 = vmatprep.subr.mxu0 0.0
        %507 = vmatpush1.msra.mxu0 0.0
        %508 = vmatprep.subr.mxu0 0.0
        %509 = vmatpush1.msra.mxu0 0.0
        %510 = vmatprep.subr.mxu0 0.0
        %511 = vmatpush1.msra.mxu0 0.0
        %512 = vmatprep.mubr.f32.mxu0 0.0
        %v513 = vand.u32 %v288, 4294901760
        %v514 = vsub.f32 %v288, %v513
        %515 = vmatmul.mubr.f32.gmra.mrb[0].mxu0 %v514
        %v516 = vpop.f32.mrb[0].mxu0
        %v517 = vadd.f32 %v443, %v516
        %v518 = vpop.f32.mrb[0].mxu0
        %519 = vdwg.mxu0
        %520 = vmatprep.subr.mxu0 0.0
        %v521 = vand.u32 %v292, 4294901760
        %522 = vmatpush1.msra.mxu0 %v521
        %523 = vmatprep.subr.mxu0 0.0
        %524 = vmatpush1.msra.mxu0 0.0
        %525 = vmatprep.subr.mxu0 0.0
        %526 = vmatpush1.msra.mxu0 0.0
        %527 = vmatprep.subr.mxu0 0.0
        %528 = vmatpush1.msra.mxu0 0.0
        %529 = vmatprep.subr.mxu0 0.0
        %530 = vmatpush1.msra.mxu0 0.0
        %531 = vmatprep.subr.mxu0 0.0
        %532 = vmatpush1.msra.mxu0 0.0
        %533 = vmatprep.subr.mxu0 0.0
        %534 = vmatpush1.msra.mxu0 0.0
        %535 = vmatprep.subr.mxu0 0.0
        %536 = vmatpush1.msra.mxu0 0.0
        %537 = vmatprep.subr.mxu0 0.0
        %538 = vmatpush1.msra.mxu0 0.0
        %539 = vmatprep.subr.mxu0 0.0
        %540 = vmatpush1.msra.mxu0 0.0
        %541 = vmatprep.subr.mxu0 0.0
        %542 = vmatpush1.msra.mxu0 0.0
        %543 = vmatprep.subr.mxu0 0.0
        %544 = vmatpush1.msra.mxu0 0.0
        %545 = vmatprep.subr.mxu0 0.0
        %546 = vmatpush1.msra.mxu0 0.0
        %547 = vmatprep.subr.mxu0 0.0
        %548 = vmatpush1.msra.mxu0 0.0
        %549 = vmatprep.subr.mxu0 0.0
        %550 = vmatpush1.msra.mxu0 0.0
        %551 = vmatprep.subr.mxu0 0.0
        %552 = vmatpush1.msra.mxu0 0.0
        %553 = vmatprep.subr.mxu0 0.0
        %554 = vmatpush1.msra.mxu0 0.0
        %555 = vmatprep.subr.mxu0 0.0
        %556 = vmatpush1.msra.mxu0 0.0
        %557 = vmatprep.subr.mxu0 0.0
        %558 = vmatpush1.msra.mxu0 0.0
        %559 = vmatprep.subr.mxu0 0.0
        %560 = vmatpush1.msra.mxu0 0.0
        %561 = vmatprep.subr.mxu0 0.0
        %562 = vmatpush1.msra.mxu0 0.0
        %563 = vmatprep.subr.mxu0 0.0
        %564 = vmatpush1.msra.mxu0 0.0
        %565 = vmatprep.subr.mxu0 0.0
        %566 = vmatpush1.msra.mxu0 0.0
        %567 = vmatprep.subr.mxu0 0.0
        %568 = vmatpush1.msra.mxu0 0.0
        %569 = vmatprep.subr.mxu0 0.0
        %570 = vmatpush1.msra.mxu0 0.0
        %571 = vmatprep.subr.mxu0 0.0
        %572 = vmatpush1.msra.mxu0 0.0
        %573 = vmatprep.subr.mxu0 0.0
        %574 = vmatpush1.msra.mxu0 0.0
        %575 = vmatprep.subr.mxu0 0.0
        %576 = vmatpush1.msra.mxu0 0.0
        %577 = vmatprep.subr.mxu0 0.0
        %578 = vmatpush1.msra.mxu0 0.0
        %579 = vmatprep.subr.mxu0 0.0
        %580 = vmatpush1.msra.mxu0 0.0
        %581 = vmatprep.subr.mxu0 0.0
        %582 = vmatpush1.msra.mxu0 0.0
        %583 = vmatprep.subr.mxu0 0.0
        %584 = vmatpush1.msra.mxu0 0.0
        %585 = vmatprep.mubr.f32.mxu0 0.0
        %v586 = vand.u32 %v288, 4294901760
        %v587 = vsub.f32 %v288, %v586
        %v588 = vand.u32 %v587, 4294901760
        %589 = vmatmul.mubr.f32.gmra.mrb[0].mxu0 %v588
        %v590 = vpop.f32.mrb[0].mxu0
        %v591 = vadd.f32 %v517, %v590
        %v592 = vpop.f32.mrb[0].mxu0
        %593 = vdwg.mxu0
        %594 = vmatprep.subr.mxu0 0.0
        %v595 = vand.u32 %v292, 4294901760
        %v596 = vsub.f32 %v292, %v595
        %v597 = vand.u32 %v596, 4294901760
        %598 = vmatpush1.msra.mxu0 %v597
        %599 = vmatprep.subr.mxu0 0.0
        %600 = vmatpush1.msra.mxu0 0.0
        %601 = vmatprep.subr.mxu0 0.0
        %602 = vmatpush1.msra.mxu0 0.0
        %603 = vmatprep.subr.mxu0 0.0
        %604 = vmatpush1.msra.mxu0 0.0
        %605 = vmatprep.subr.mxu0 0.0
        %606 = vmatpush1.msra.mxu0 0.0
        %607 = vmatprep.subr.mxu0 0.0
        %608 = vmatpush1.msra.mxu0 0.0
        %609 = vmatprep.subr.mxu0 0.0
        %610 = vmatpush1.msra.mxu0 0.0
        %611 = vmatprep.subr.mxu0 0.0
        %612 = vmatpush1.msra.mxu0 0.0
        %613 = vmatprep.subr.mxu0 0.0
        %614 = vmatpush1.msra.mxu0 0.0
        %615 = vmatprep.subr.mxu0 0.0
        %616 = vmatpush1.msra.mxu0 0.0
        %617 = vmatprep.subr.mxu0 0.0
        %618 = vmatpush1.msra.mxu0 0.0
        %619 = vmatprep.subr.mxu0 0.0
        %620 = vmatpush1.msra.mxu0 0.0
        %621 = vmatprep.subr.mxu0 0.0
        %622 = vmatpush1.msra.mxu0 0.0
        %623 = vmatprep.subr.mxu0 0.0
        %624 = vmatpush1.msra.mxu0 0.0
        %625 = vmatprep.subr.mxu0 0.0
        %626 = vmatpush1.msra.mxu0 0.0
        %627 = vmatprep.subr.mxu0 0.0
        %628 = vmatpush1.msra.mxu0 0.0
        %629 = vmatprep.subr.mxu0 0.0
        %630 = vmatpush1.msra.mxu0 0.0
        %631 = vmatprep.subr.mxu0 0.0
        %632 = vmatpush1.msra.mxu0 0.0
        %633 = vmatprep.subr.mxu0 0.0
        %634 = vmatpush1.msra.mxu0 0.0
        %635 = vmatprep.subr.mxu0 0.0
        %636 = vmatpush1.msra.mxu0 0.0
        %637 = vmatprep.subr.mxu0 0.0
        %638 = vmatpush1.msra.mxu0 0.0
        %639 = vmatprep.subr.mxu0 0.0
        %640 = vmatpush1.msra.mxu0 0.0
        %641 = vmatprep.subr.mxu0 0.0
        %642 = vmatpush1.msra.mxu0 0.0
        %643 = vmatprep.subr.mxu0 0.0
        %644 = vmatpush1.msra.mxu0 0.0
        %645 = vmatprep.subr.mxu0 0.0
        %646 = vmatpush1.msra.mxu0 0.0
        %647 = vmatprep.subr.mxu0 0.0
        %648 = vmatpush1.msra.mxu0 0.0
        %649 = vmatprep.subr.mxu0 0.0
        %650 = vmatpush1.msra.mxu0 0.0
        %651 = vmatprep.subr.mxu0 0.0
        %652 = vmatpush1.msra.mxu0 0.0
        %653 = vmatprep.subr.mxu0 0.0
        %654 = vmatpush1.msra.mxu0 0.0
        %655 = vmatprep.subr.mxu0 0.0
        %656 = vmatpush1.msra.mxu0 0.0
        %657 = vmatprep.subr.mxu0 0.0
        %658 = vmatpush1.msra.mxu0 0.0
        %659 = vmatprep.subr.mxu0 0.0
        %660 = vmatpush1.msra.mxu0 0.0
        %661 = vmatprep.mubr.f32.mxu0 0.0
        %v662 = vand.u32 %v288, 4294901760
        %663 = vmatmul.mubr.f32.gmra.mrb[0].mxu0 %v662
        %v664 = vpop.f32.mrb[0].mxu0
        %v665 = vadd.f32 %v591, %v664
        %v666 = vpop.f32.mrb[0].mxu0
        %667 = vdwg.mxu0
        %668 = vmatprep.subr.mxu0 0.0
        %v669 = vand.u32 %v292, 4294901760
        %670 = vmatpush1.msra.mxu0 %v669
        %671 = vmatprep.subr.mxu0 0.0
        %672 = vmatpush1.msra.mxu0 0.0
        %673 = vmatprep.subr.mxu0 0.0
        %674 = vmatpush1.msra.mxu0 0.0
        %675 = vmatprep.subr.mxu0 0.0
        %676 = vmatpush1.msra.mxu0 0.0
        %677 = vmatprep.subr.mxu0 0.0
        %678 = vmatpush1.msra.mxu0 0.0
        %679 = vmatprep.subr.mxu0 0.0
        %680 = vmatpush1.msra.mxu0 0.0
        %681 = vmatprep.subr.mxu0 0.0
        %682 = vmatpush1.msra.mxu0 0.0
        %683 = vmatprep.subr.mxu0 0.0
        %684 = vmatpush1.msra.mxu0 0.0
        %685 = vmatprep.subr.mxu0 0.0
        %686 = vmatpush1.msra.mxu0 0.0
        %687 = vmatprep.subr.mxu0 0.0
        %688 = vmatpush1.msra.mxu0 0.0
        %689 = vmatprep.subr.mxu0 0.0
        %690 = vmatpush1.msra.mxu0 0.0
        %691 = vmatprep.subr.mxu0 0.0
        %692 = vmatpush1.msra.mxu0 0.0
        %693 = vmatprep.subr.mxu0 0.0
        %694 = vmatpush1.msra.mxu0 0.0
        %695 = vmatprep.subr.mxu0 0.0
        %696 = vmatpush1.msra.mxu0 0.0
        %697 = vmatprep.subr.mxu0 0.0
        %698 = vmatpush1.msra.mxu0 0.0
        %699 = vmatprep.subr.mxu0 0.0
        %700 = vmatpush1.msra.mxu0 0.0
        %701 = vmatprep.subr.mxu0 0.0
        %702 = vmatpush1.msra.mxu0 0.0
        %703 = vmatprep.subr.mxu0 0.0
        %704 = vmatpush1.msra.mxu0 0.0
        %705 = vmatprep.subr.mxu0 0.0
        %706 = vmatpush1.msra.mxu0 0.0
        %707 = vmatprep.subr.mxu0 0.0
        %708 = vmatpush1.msra.mxu0 0.0
        %709 = vmatprep.subr.mxu0 0.0
        %710 = vmatpush1.msra.mxu0 0.0
        %711 = vmatprep.subr.mxu0 0.0
        %712 = vmatpush1.msra.mxu0 0.0
        %713 = vmatprep.subr.mxu0 0.0
        %714 = vmatpush1.msra.mxu0 0.0
        %715 = vmatprep.subr.mxu0 0.0
        %716 = vmatpush1.msra.mxu0 0.0
        %717 = vmatprep.subr.mxu0 0.0
        %718 = vmatpush1.msra.mxu0 0.0
        %719 = vmatprep.subr.mxu0 0.0
        %720 = vmatpush1.msra.mxu0 0.0
        %721 = vmatprep.subr.mxu0 0.0
        %722 = vmatpush1.msra.mxu0 0.0
        %723 = vmatprep.subr.mxu0 0.0
        %724 = vmatpush1.msra.mxu0 0.0
        %725 = vmatprep.subr.mxu0 0.0
        %726 = vmatpush1.msra.mxu0 0.0
        %727 = vmatprep.subr.mxu0 0.0
        %728 = vmatpush1.msra.mxu0 0.0
        %729 = vmatprep.subr.mxu0 0.0
        %730 = vmatpush1.msra.mxu0 0.0
        %731 = vmatprep.subr.mxu0 0.0
        %732 = vmatpush1.msra.mxu0 0.0
        %733 = vmatprep.mubr.f32.mxu0 0.0
        %v734 = vand.u32 %v288, 4294901760
        %735 = vmatmul.mubr.f32.gmra.mrb[0].mxu0 %v734
        %v736 = vpop.f32.mrb[0].mxu0
        %v737 = vadd.f32 %v665, %v736
        %v738 = vpop.f32.mrb[0].mxu0
        %739 = vdwg.mxu0
        %vm740 = vcmask 64512
        %v741 = vsel %vm740, %v737, -inf
        %742 = vmax.xlane.f32.xlu0 %v741
        %v743 = vpop.xlane.xlu0 %742
        %v744 = vsub.f32 %v737, %v743
        %v745 = vmul.f32 %v744, 1.442695
        %v746 = vpow.pop %v745
        %v747 = vsel %vm740, %v746, 0.0
        %748 = vadd.xlane.f32.xlu0 %v747
        %v749 = vpop.xlane.xlu0 %748
        %v750 = vrcp.pop %v749
        %v751 = vmul.f32 1.0, %v750
        %v752 = vmul.f32 %v746, %v751
        %753 = vst.msk [vmem:[%s223] sm:$0xff] %vm740, %v752
        %s754 = sand.u32 %s136, 1
        %s755 = scalar_lea.sflag [#allocation3], %s754
        %s756 = sand.u32 %s136, 1
        %s757 = smul.addr %s756, 8
        %s758 = scalar_lea.vmem [#allocation2], %s757
        // Predicated region
        $region37: #{tpu_custom_call.1} parent=35 // pred_check
          %p759 = pneg %p146
        $region38: #{tpu_custom_call.1} parent=35 // pred_check_branch
          %761 = sbr.rel (%p759) target = $region40
        $region39: #{tpu_custom_call.1} parent=35 // pred_region
          %s763 = ssub.s32 128, 128
          %764 = vsyncadd %s755, %s763
          %s765 = sadd.s32 %s23, %s22
          %s766 = smul.addr %s765, 128
          %s767 = scalar_lea.hbm %s4, %s766
          %s769 = sshll.u32 %s758, 4
          %s770 = int_to_ptr.vmem [resolvable:$true] %s769
          %772 = dma.vmem_to_hbm [thread:$0]  %s770, 128, %s767, %s755
        $region40: #{tpu_custom_call.1} parent=35 // pred_fallthru
          _
      $region36: #{tpu_custom_call.1} parent=5 // pred_fallthru
        _
      %p773 = scmp.le.s32.totalorder 2, %s13
      // Predicated region
      $region41: #{tpu_custom_call.1} parent=5 // pred_check
        %p774 = pneg %p773
      $region42: #{tpu_custom_call.1} parent=5 // pred_check_branch
        %776 = sbr.rel (%p774) target = $region44
      $region43: #{tpu_custom_call.1} parent=5 // pred_region
        %s777 = ssub.s32 %s13, 2
        // Predicated region
        $region45: #{tpu_custom_call.1} parent=43 // pred_check
          %p778 = pneg %p152
        $region46: #{tpu_custom_call.1} parent=43 // pred_check_branch
          %780 = sbr.rel (%p778) target = $region48
        $region47: #{tpu_custom_call.1} parent=43 // pred_region
          %s781 = sand.u32 %s137, 1
          %s782 = scalar_lea.sflag [#allocation3], %s781
          %s783 = sand.u32 %s137, 1
          %s784 = smul.addr %s783, 8
          %s785 = scalar_lea.vmem [#allocation2], %s784
          %786 = dma.done %s782, 128
        $region48: #{tpu_custom_call.1} parent=43 // pred_fallthru
          _
      $region44: #{tpu_custom_call.1} parent=5 // pred_fallthru
        _
    $region6: #{tpu_custom_call.1} parent=1 // loop_footer
      %s17 = sadd.s32 1, %s13
    $region7: #{tpu_custom_call.1} parent=1 // loop_footer_branch
      %12 = sbr.rel target = $region3
    $region8: #{tpu_custom_call.1} parent=1 // loop_exit
      _
    %787 = vsyncpa [#allocation3], 1
    %s788 = scalar_lea.sflag [#allocation3], 1
    %789 = vsyncpa %s788, 1

</llo_original>
